<compile_context>
chip_gen: v7x
topology: tpu7x:2x2x1
jax: 0.10.0
libtpu: 0.0.40
codegen_flags: <defaults>
</compile_context>

<pallas_src>
import functools

import jax
import jax.numpy as jnp
from jax import lax
from jax.experimental import pallas as pl
from jax.experimental.pallas import tpu as pltpu

LANES = 128  # TPU lane width; class dim is padded to this for lane-dense stores


def _round_up(x, m):
    return ((x + m - 1) // m) * m


def _tpu_vmem_bytes():
    """Physical VMEM per TensorCore (generation-aware); conservative fallback."""
    try:
        cap = int(getattr(pltpu.get_tpu_info(), "vmem_capacity_bytes", 0))
        if cap > 0:
            return cap
    except Exception:
        pass
    return 64 * 1024 * 1024  # v7x per-TC VMEM; safe lower bound for v5e/v6e


def _vmem_limit(estimate_bytes, vmem_cap):
    # 2x headroom over the static footprint, clamped to [16 MiB, 0.8 * physical]
    hi = int(0.8 * vmem_cap)
    return int(min(hi, max(16 * 1024 * 1024, 2 * estimate_bytes)))


# ----------------------------------------------------------------------------
# Kernel 1: z = relu(x @ W1 + b1) @ W2 + b2   (row-tiled, megacore-parallel)
# Runs exactly once; its (N_pad, 128) output feeds the propagation kernel.
# ----------------------------------------------------------------------------
def _mlp_kernel(x_ref, w1_ref, b1_ref, w2_ref, b2_ref, z_ref):
    h = jnp.dot(x_ref[...], w1_ref[...], preferred_element_type=jnp.float32)
    h = jnp.maximum(h + b1_ref[...], 0.0)
    z_ref[...] = (jnp.dot(h, w2_ref[...], preferred_element_type=jnp.float32)
                  + b2_ref[...])


def _mlp_forward(x_pad, w1, b1, w2_pad, b2_pad, *, tile, vmem_cap):
    n_pad, nfeat = x_pad.shape
    hidden = w1.shape[1]
    grid = (n_pad // tile,)

    est_vmem = (2 * tile * nfeat * 4 + 2 * tile * LANES * 4
                + 2 * 4 * (nfeat * hidden + hidden + hidden * LANES + LANES))
    cost = pl.CostEstimate(
        flops=int(2 * n_pad * (nfeat * hidden + hidden * LANES)),
        transcendentals=0,
        bytes_accessed=int(4 * (n_pad * nfeat + nfeat * hidden + hidden
                                + hidden * LANES + LANES + n_pad * LANES)))

    return pl.pallas_call(
        _mlp_kernel,
        out_shape=jax.ShapeDtypeStruct((n_pad, LANES), jnp.float32),
        grid=grid,
        in_specs=[
            pl.BlockSpec((tile, nfeat), lambda i: (i, 0)),
            pl.BlockSpec((nfeat, hidden), lambda i: (0, 0)),
            pl.BlockSpec((1, hidden), lambda i: (0, 0)),
            pl.BlockSpec((hidden, LANES), lambda i: (0, 0)),
            pl.BlockSpec((1, LANES), lambda i: (0, 0)),
        ],
        out_specs=pl.BlockSpec((tile, LANES), lambda i: (i, 0)),
        compiler_params=pltpu.CompilerParams(
            dimension_semantics=("parallel",),     # v7x: shard row tiles over 2 TCs
            vmem_limit_bytes=_vmem_limit(est_vmem, vmem_cap)),
        cost_estimate=cost,
    )(x_pad, w1, b1.reshape(1, -1), w2_pad, b2_pad.reshape(1, -1))


# ----------------------------------------------------------------------------
# Kernel 2a: RESIDENT propagation — whole bf16 A_hat / f32 z live in VMEM
# (single-buffered, un-pipelined operands), K steps as an in-kernel fori_loop.
# ----------------------------------------------------------------------------
def _appnp_resident_kernel(z_ref, a_ref, o_ref, hk_ref, *, K, alpha, n_classes):
    # h_0 = z   (h_k kept in bf16: MXU-native rhs, half the scratch footprint)
    hk_ref[...] = z_ref[...].astype(jnp.bfloat16)

    def one_step():
        h = jnp.dot(a_ref[...], hk_ref[...], preferred_element_type=jnp.float32)
        return (1.0 - alpha) * h + alpha * z_ref[...]

    def body(_, carry):
        hk_ref[...] = one_step().astype(jnp.bfloat16)
        return carry

    lax.fori_loop(0, K - 1, body, jnp.int32(0))

    # Final step fused with log_softmax over the first n_classes lanes.
    new_h = one_step()
    col = lax.broadcasted_iota(jnp.int32, new_h.shape, 1)
    logits = jnp.where(col < n_classes, new_h, -jnp.inf)
    m = jnp.max(logits, axis=1, keepdims=True)
    shifted = logits - m
    lse = jnp.log(jnp.sum(jnp.exp(shifted), axis=1, keepdims=True))
    o_ref[...] = shifted - lse


# ----------------------------------------------------------------------------
# Kernel 2b: STREAMED propagation.
#   grid = (K, row-tiles i, contraction-tiles j)     (reduction axis innermost)
#   h_{k+1}[i] = (1-alpha) * sum_j A_hat[i,j] @ h_k[j] + alpha * z[i]
#   h_k lives in a bf16 ping-pong VMEM scratch; h_0 is seeded block-by-block
#   from streamed z while (k==0, i==0) sweeps the contraction tiles.
# ----------------------------------------------------------------------------
def _appnp_stream_kernel(z_seed_ref, z_tel_ref, a_ref, o_ref, hk_ref, acc_ref, *,
                         alpha, n_classes, tile_m, tile_k, n_pad):
    k = pl.program_id(0)            # propagation step (sequential)
    i = pl.program_id(1)            # output row tile
    j = pl.program_id(2)            # contraction tile (reduction, innermost)
    nk = pl.num_programs(0)
    nj = pl.num_programs(2)

    src_base = (k % 2) * n_pad      # h_k ping-pong slots
    dst_base = ((k + 1) % 2) * n_pad

    # Seed h_0 = z block-by-block (no resident z copy, no serialized full seed).
    @pl.when((k == 0) & (i == 0))
    def _():
        hk_ref[pl.ds(pl.multiple_of(j * tile_k, tile_k), tile_k), :] = (
            z_seed_ref[...].astype(jnp.bfloat16))

    # A_hat[i, j] @ h_k[j]   (bf16 MXU operands, f32 accumulation)
    h_blk = hk_ref[pl.ds(pl.multiple_of(src_base + j * tile_k, tile_k), tile_k), :]
    prod = jnp.dot(a_ref[...], h_blk, preferred_element_type=jnp.float32)

    @pl.when(j == 0)
    def _():
        acc_ref[...] = prod          # direct assign: no zeros-init + add

    @pl.when(j > 0)
    def _():
        acc_ref[...] += prod

    # Finish propagation step k for row tile i (new_h computed exactly once).
    @pl.when(j == nj - 1)
    def _():
        new_h = (1.0 - alpha) * acc_ref[...] + alpha * z_tel_ref[...]
        # The (i,0) output block is flushed to HBM once per (k,i) anyway; make
        # that writeback carry live data instead of uninitialized VMEM.
        o_ref[...] = new_h

        @pl.when(k < nk - 1)
        def _():
            hk_ref[pl.ds(pl.multiple_of(dst_base + i * tile_m, tile_m),
                         tile_m), :] = new_h.astype(jnp.bfloat16)

        @pl.when(k == nk - 1)
        def _():
            # log_softmax over the first n_classes lanes (padded lanes -> -inf).
            col = lax.broadcasted_iota(jnp.int32, new_h.shape, 1)
            logits = jnp.where(col < n_classes, new_h, -jnp.inf)
            m = jnp.max(logits, axis=1, keepdims=True)
            shifted = logits - m
            lse = jnp.log(jnp.sum(jnp.exp(shifted), axis=1, keepdims=True))
            o_ref[...] = shifted - lse


# ----------------------------------------------------------------------------
# Wrapper: full APPNP_Net forward (eval mode: dropout = identity)
# ----------------------------------------------------------------------------
def appnp_net_forward(x, w1, b1, w2, b2, a_hat, *, K, alpha,
                      tile_m=None, tile_k=None, force_stream=False):
    """x: (N, F) f32, w1: (F, H), b1: (H,), w2: (H, C), b2: (C,), a_hat: (N, N).
    Returns (N, C) f32 log-probabilities."""
    assert K >= 1
    n, nfeat = x.shape
    hidden = w1.shape[1]
    n_classes = w2.shape[1]
    assert n_classes <= LANES

    vmem_cap = _tpu_vmem_bytes()
    n128 = _round_up(n, LANES)

    # Resident if bf16 A_hat fits in ~half of physical VMEM (generation-aware:
    # ~64 MiB budget on v5e/v6e's 128 MiB, ~32 MiB on v7x's 64 MiB). Resident
    # means A is DMA'd exactly once instead of K times (K-fold HBM saving).
    resident_budget = min(vmem_cap // 2, 64 * 1024 * 1024)
    resident = (not force_stream) and (n128 * n128 * 2 <= resident_budget)

    if resident:
        n_pad = n128
    else:
        tile_m = 256 if tile_m is None else tile_m
        tile_k = 2048 if tile_k is None else tile_k
        assert tile_m % LANES == 0 and tile_k % tile_m == 0
        tile_k = max(tile_m, min(tile_k, _round_up(n, tile_m)))
        n_pad = _round_up(n, tile_k)

    # --- pad to lane/tile-friendly shapes ------------------------------------
    x_pad = jnp.zeros((n_pad, nfeat), jnp.float32).at[:n, :].set(x)
    a_pad = jnp.zeros((n_pad, n_pad), jnp.float32).at[:n, :n].set(a_hat)
    a_bf16 = a_pad.astype(jnp.bfloat16)            # halves HBM traffic / footprint
    w2_pad = jnp.zeros((hidden, LANES), jnp.float32).at[:, :n_classes].set(w2)
    b2_pad = jnp.zeros((LANES,), jnp.float32).at[:n_classes].set(b2)

    # --- MLP (runs once); row tile decoupled from propagation tiling so the
    # "parallel" axis still has >1 step to shard over v7x's 2 TensorCores.
    mlp_tile = 256 if n_pad % 256 == 0 else LANES
    mlp_tile = min(mlp_tile, n_pad)
    z = _mlp_forward(x_pad, w1, b1, w2_pad, b2_pad, tile=mlp_tile,
                     vmem_cap=vmem_cap)

    if resident:
        est_vmem = (n_pad * n_pad * 2                       # A (bf16, single buf)
                    + n_pad * LANES * (4 + 4 + 2 + 4))      # z, out, hk, temp
        cost = pl.CostEstimate(
            flops=int(2 * K * n_pad * n_pad * LANES + 3 * K * n_pad * LANES),
            transcendentals=int(n_pad * LANES),
            bytes_accessed=int(n_pad * n_pad * 2 + 2 * n_pad * LANES * 4))
        kernel = functools.partial(_appnp_resident_kernel, K=int(K),
                                   alpha=float(alpha), n_classes=n_classes)
        out_pad = pl.pallas_call(
            kernel,
            out_shape=jax.ShapeDtypeStruct((n_pad, LANES), jnp.float32),
            # No grid: K steps run as an in-kernel fori_loop; A/z/out are whole
            # arrays in VMEM (single buffer each -> no pointless double-buffer).
            in_specs=[
                pl.BlockSpec(memory_space=pltpu.MemorySpace.VMEM),   # z
                pl.BlockSpec(memory_space=pltpu.MemorySpace.VMEM),   # A_hat (bf16)
            ],
            out_specs=pl.BlockSpec(memory_space=pltpu.MemorySpace.VMEM),
            scratch_shapes=[pltpu.VMEM((n_pad, LANES), jnp.bfloat16)],  # h_k
            compiler_params=pltpu.CompilerParams(
                vmem_limit_bytes=_vmem_limit(est_vmem, vmem_cap)),
            cost_estimate=cost,
        )(z, a_bf16)
        return out_pad[:n, :n_classes]

    # ---------------- streamed path ------------------------------------------
    n_i = n_pad // tile_m
    n_j = n_pad // tile_k

    est_vmem = (2 * tile_m * tile_k * 2      # A blocks (bf16, double-buffered)
                + 2 * tile_k * LANES * 4     # z (h_0-seed view) blocks
                + 2 * tile_m * LANES * 4     # z (teleport view) blocks
                + 2 * tile_m * LANES * 4     # output blocks
                + 2 * n_pad * LANES * 2      # h_k ping-pong scratch (bf16)
                + tile_m * LANES * 4)        # row-tile accumulator
    cost = pl.CostEstimate(
        flops=int(2 * K * n_pad * n_pad * LANES + 3 * K * n_pad * LANES),
        transcendentals=int(n_pad * LANES),
        bytes_accessed=int(K * n_pad * n_pad * 2
                           + (2 * K + 2) * n_pad * LANES * 4))

    def z_seed_map(k, i, j):
        # Varies only while (k==0, i==0) sweeps the contraction tiles (the only
        # time it is read, to seed h_0); constant afterwards -> ~1 HBM pass of z
        # total instead of one fetch per grid step.
        return (jnp.where((k == 0) & (i == 0), j, 0), 0)

    kernel = functools.partial(_appnp_stream_kernel, alpha=float(alpha),
                               n_classes=n_classes, tile_m=tile_m,
                               tile_k=tile_k, n_pad=n_pad)
    out_pad = pl.pallas_call(
        kernel,
        out_shape=jax.ShapeDtypeStruct((n_pad, LANES), jnp.float32),
        grid=(K, n_i, n_j),
        in_specs=[
            pl.BlockSpec((tile_k, LANES), z_seed_map),               # z -> h_0 seed
            pl.BlockSpec((tile_m, LANES), lambda k, i, j: (i, 0)),   # z teleport
            pl.BlockSpec((tile_m, tile_k), lambda k, i, j: (i, j)),  # A_hat streamed
        ],
        out_specs=pl.BlockSpec((tile_m, LANES), lambda k, i, j: (i, 0)),
        scratch_shapes=[
            pltpu.VMEM((2 * n_pad, LANES), jnp.bfloat16),  # h_k ping-pong (bf16)
            pltpu.VMEM((tile_m, LANES), jnp.float32),      # row-tile accumulator
        ],
        # NOTE: the row-tile axis cannot be "parallel": step k reads the full
        # h_k produced by ALL row tiles of step k-1, and h_k lives in per-core
        # VMEM scratch (no cross-core sync inside one pallas_call).
        compiler_params=pltpu.CompilerParams(
            dimension_semantics=("arbitrary", "arbitrary", "arbitrary"),
            vmem_limit_bytes=_vmem_limit(est_vmem, vmem_cap)),
        cost_estimate=cost,
    )(z, z, a_bf16)

    return out_pad[:n, :n_classes]


# ----------------------------------------------------------------------------
# Glue: dense symmetrically-normalized adjacency (PyG gcn_norm with self-loops).
# ----------------------------------------------------------------------------
def build_norm_adj(edge_index, num_nodes):
    src, dst = edge_index[0], edge_index[1]
    adj = jnp.zeros((num_nodes, num_nodes), jnp.float32)
    adj = adj.at[dst, src].add(1.0)                       # message src -> dst
    adj = adj + jnp.eye(num_nodes, dtype=jnp.float32)     # self-loops
    deg = jnp.sum(adj, axis=1)
    d_inv_sqrt = jnp.where(deg > 0, 1.0 / jnp.sqrt(deg), 0.0)
    return d_inv_sqrt[:, None] * adj * d_inv_sqrt[None, :]


# PyTorch nn.Linear style init: U(-1/sqrt(fan_in), +1/sqrt(fan_in))
def init_linear(key, fan_in, fan_out):
    kw, kb = jax.random.split(key)
    bound = 1.0 / jnp.sqrt(fan_in)
    w = jax.random.uniform(kw, (fan_in, fan_out), jnp.float32, -bound, bound)
    b = jax.random.uniform(kb, (fan_out,), jnp.float32, -bound, bound)
    return w, b


if __name__ == "__main__":
    N_NODES = 300     # graph nodes
    NFEAT = 32        # input feature dim
    HIDDEN = 64       # args.hidden
    NCLASS = 8        # number of classes
    K = 10            # args.K
    ALPHA = 0.1       # args.alpha
    E = 1200          # edges

    key = jax.random.PRNGKey(0)
    kx, ke, k1, k2 = jax.random.split(key, 4)

    x = jax.random.normal(kx, (N_NODES, NFEAT), jnp.float32)
    edge_index = jax.random.randint(ke, (2, E), 0, N_NODES, dtype=jnp.int32)
    a_hat = build_norm_adj(edge_index, N_NODES)

    w1, b1 = init_linear(k1, NFEAT, HIDDEN)     # lin1
    w2, b2 = init_linear(k2, HIDDEN, NCLASS)    # lin2

    # Path 1: resident -- bf16 A_hat fully in VMEM, K-step fori_loop in-kernel.
    out_resident = appnp_net_forward(x, w1, b1, w2, b2, a_hat, K=K, alpha=ALPHA)
    # Path 2: streamed -- rectangular (128, 256) A blocks, grid (K, 4, 2);
    # exercises hk ping-pong, incremental h_0 seeding and per-(k,i) writeback.
    out_streamed = appnp_net_forward(x, w1, b1, w2, b2, a_hat, K=K, alpha=ALPHA,
                                     tile_m=128, tile_k=256, force_stream=True)
    out_resident, out_streamed = jax.block_until_ready((out_resident, out_streamed))

    # Pure-JAX reference (same bf16 quantization of A_hat as the kernel path).
    a_ref = a_hat.astype(jnp.bfloat16).astype(jnp.float32)
    h = jnp.maximum(jnp.dot(x, w1, precision="highest") + b1, 0.0)
    z = jnp.dot(h, w2, precision="highest") + b2
    hk = z
    for _ in range(K):
        hk = (1.0 - ALPHA) * jnp.dot(a_ref, hk, precision="highest") + ALPHA * z
    ref = jax.nn.log_softmax(hk, axis=1)

    assert out_resident.shape == (N_NODES, NCLASS)
    assert out_streamed.shape == (N_NODES, NCLASS)
    # rows of exp(log_softmax) must sum to 1
    assert bool(jnp.all(jnp.abs(jnp.exp(out_resident).sum(axis=1) - 1.0) < 1e-3))
    assert bool(jnp.all(jnp.abs(jnp.exp(out_streamed).sum(axis=1) - 1.0) < 1e-3))
    # both kernel paths match the reference (bf16 h_k quantization -> loose tol)
    assert bool(jnp.max(jnp.abs(out_resident - ref)) < 1e-1)
    assert bool(jnp.max(jnp.abs(out_streamed - ref)) < 1e-1)

    print("KERNEL_OK")
</pallas_src>

<mosaic_0001>
module attributes {stable_mosaic.version = 11 : i64} {
  func.func @_mlp_kernel(%arg0: i32, %arg1: memref<128x32xf32, #tpu.memory_space<vmem>>, %arg2: memref<32x64xf32, #tpu.memory_space<vmem>>, %arg3: memref<1x64xf32, #tpu.memory_space<vmem>>, %arg4: memref<64x128xf32, #tpu.memory_space<vmem>>, %arg5: memref<1x128xf32, #tpu.memory_space<vmem>>, %arg6: memref<128x128xf32, #tpu.memory_space<vmem>>) attributes {dimension_semantics = [#tpu.dimension_semantics<parallel>], iteration_bounds = array<i64: 3>, scalar_prefetch = 0 : i64, scratch_operands = 0 : i64, tpu.core_type = #tpu.core_type<tc>, window_params = [{transform_indices = @transform_0, window_bounds = array<i64: 128, 32>}, {pipeline_mode = #tpu.pipeline_mode<synchronous>, transform_indices = @transform_1, window_bounds = array<i64: 32, 64>}, {pipeline_mode = #tpu.pipeline_mode<synchronous>, transform_indices = @transform_2, window_bounds = array<i64: 1, 64>}, {pipeline_mode = #tpu.pipeline_mode<synchronous>, transform_indices = @transform_3, window_bounds = array<i64: 64, 128>}, {pipeline_mode = #tpu.pipeline_mode<synchronous>, transform_indices = @transform_4, window_bounds = array<i64: 1, 128>}, {transform_indices = @transform_5, window_bounds = array<i64: 128, 128>}]} {
    %c0 = arith.constant 0 : index
    %c0_0 = arith.constant 0 : index
    %0 = vector.load %arg1[%c0, %c0_0] : memref<128x32xf32, #tpu.memory_space<vmem>>, vector<128x32xf32>
    %c0_1 = arith.constant 0 : index
    %c0_2 = arith.constant 0 : index
    %1 = vector.load %arg2[%c0_1, %c0_2] : memref<32x64xf32, #tpu.memory_space<vmem>>, vector<32x64xf32>
    %cst = arith.constant dense<0.000000e+00> : vector<128x64xf32>
    %2 = tpu.matmul %0, %1, %cst {dimension_numbers = #tpu.dot_dimension_numbers<[1], [0], [0], [1], [0, 0, 1, 1], [], []>} : vector<128x32xf32>, vector<32x64xf32>, vector<128x64xf32> -> vector<128x64xf32>
    %c0_3 = arith.constant 0 : index
    %c0_4 = arith.constant 0 : index
    %3 = vector.load %arg3[%c0_3, %c0_4] : memref<1x64xf32, #tpu.memory_space<vmem>>, vector<1x64xf32>
    %4 = vector.broadcast %3 : vector<1x64xf32> to vector<128x64xf32>
    %5 = arith.addf %2, %4 : vector<128x64xf32>
    %cst_5 = arith.constant 0.000000e+00 : f32
    %6 = vector.broadcast %cst_5 : f32 to vector<128x64xf32>
    %7 = arith.maximumf %5, %6 : vector<128x64xf32>
    %c0_6 = arith.constant 0 : index
    %c0_7 = arith.constant 0 : index
    %8 = vector.load %arg4[%c0_6, %c0_7] : memref<64x128xf32, #tpu.memory_space<vmem>>, vector<64x128xf32>
    %cst_8 = arith.constant dense<0.000000e+00> : vector<128x128xf32>
    %9 = tpu.matmul %7, %8, %cst_8 {dimension_numbers = #tpu.dot_dimension_numbers<[1], [0], [0], [1], [0, 0, 1, 1], [], []>} : vector<128x64xf32>, vector<64x128xf32>, vector<128x128xf32> -> vector<128x128xf32>
    %c0_9 = arith.constant 0 : index
    %c0_10 = arith.constant 0 : index
    %10 = vector.load %arg5[%c0_9, %c0_10] : memref<1x128xf32, #tpu.memory_space<vmem>>, vector<1x128xf32>
    %11 = vector.broadcast %10 : vector<1x128xf32> to vector<128x128xf32>
    %12 = arith.addf %9, %11 : vector<128x128xf32>
    %c0_11 = arith.constant 0 : index
    %c0_12 = arith.constant 0 : index
    %13 = vector.load %arg6[%c0_11, %c0_12] : memref<128x128xf32, #tpu.memory_space<vmem>>, vector<128x128xf32>
    tpu.vector_store %arg6[%c0_11, %c0_12], %12 {strides = array<i32>} : memref<128x128xf32, #tpu.memory_space<vmem>>, vector<128x128xf32>,
    return
  }
  func.func @transform_0(%arg0: i32) -> (i32, i32) {
    %c0_i32 = arith.constant 0 : i32
    %c0_i32_0 = arith.constant 0 : i32
    return %arg0, %c0_i32 : i32, i32
  }
  func.func @transform_1(%arg0: i32) -> (i32, i32) {
    %c0_i32 = arith.constant 0 : i32
    %c0_i32_0 = arith.constant 0 : i32
    %c0_i32_1 = arith.constant 0 : i32
    return %c0_i32, %c0_i32_0 : i32, i32
  }
  func.func @transform_2(%arg0: i32) -> (i32, i32) {
    %c0_i32 = arith.constant 0 : i32
    %c0_i32_0 = arith.constant 0 : i32
    %c0_i32_1 = arith.constant 0 : i32
    return %c0_i32, %c0_i32_0 : i32, i32
  }
  func.func @transform_3(%arg0: i32) -> (i32, i32) {
    %c0_i32 = arith.constant 0 : i32
    %c0_i32_0 = arith.constant 0 : i32
    %c0_i32_1 = arith.constant 0 : i32
    return %c0_i32, %c0_i32_0 : i32, i32
  }
  func.func @transform_4(%arg0: i32) -> (i32, i32) {
    %c0_i32 = arith.constant 0 : i32
    %c0_i32_0 = arith.constant 0 : i32
    %c0_i32_1 = arith.constant 0 : i32
    return %c0_i32, %c0_i32_0 : i32, i32
  }
  func.func @transform_5(%arg0: i32) -> (i32, i32) {
    %c0_i32 = arith.constant 0 : i32
    %c0_i32_0 = arith.constant 0 : i32
    return %arg0, %c0_i32 : i32, i32
  }
}

</mosaic_0001>

<llo_original>
// kernel: tpu_custom_call.1
$region0: #{tpu_custom_call.1}
  #allocation0 [shape = 'u32[]', space=smem, size = 0x4, offset = 0x4, fixed_abs, tag = 'smem constant byte address 0x4 - core index']
  #allocation1 [shape = 'u32[144,128]{1,0:T(1,128)}', space=vmem, size = 0x12000, scoped, tag = 'internal scratch']
  %s0 = inlined_call_operand.vmem [shape: f32[384,32], index: 0, kind: input, shape index: {}]
  %s1 = inlined_call_operand.vmem [shape: f32[32,64], index: 1, kind: input, shape index: {}]
  %s2 = inlined_call_operand.vmem [shape: f32[1,64], index: 2, kind: input, shape index: {}]
  %s3 = inlined_call_operand.vmem [shape: f32[64,128], index: 3, kind: input, shape index: {}]
  %s4 = inlined_call_operand.vmem [shape: f32[1,128], index: 4, kind: input, shape index: {}]
  %s5 = inlined_call_operand.hbm [shape: f32[384,128], index: 5, kind: output, shape index: {}]
  %s6 = sld [smem:[#allocation0]]
  $region53: #{tpu_custom_call.1} parent=0
    _
  %s8 = ssub.s32 1, %s6
  %s9 = scalar_select 0, %s8, %s6
  $region1: #{tpu_custom_call.1} parent=0
    #allocation2 [shape = 'u8[131072]{0}', space=vmem, size = 0x20000, scoped, tag = 'output window, operand 0']
    #allocation3 [shape = 's32[2]{0}', space=sflag, size = 0x8, scoped, tag = 'scoped memory for tpu_custom_call.1']
    %10 = vsyncpa [#allocation3], 0
    %s11 = scalar_lea.sflag [#allocation3], 1
    %12 = vsyncpa %s11, 0
    loop: start=0, step=1, limit=5
    $region2: #{tpu_custom_call.1} parent=1 // loop_pre_header
      _
    $region3: #{tpu_custom_call.1} parent=1 // loop_header
      %s14 = sphi 0, %s18
      %p15 = scmp.ge.s32.totalorder %s14, 5
      %s24 = sphi 0, %s26
      %s27 = sphi 0, %s24
      %s28 = sphi 0, %s27
      %s44 = sphi 0, %s28
      %s48 = sphi 0, %s48
      %s50 = sphi 0, %s48
      %s51 = sphi 0, %s50
      %s65 = sphi 0, %s51
      %s69 = sphi 0, %s69
      %s71 = sphi 0, %s69
      %s72 = sphi 0, %s71
      %s86 = sphi 0, %s72
      %s90 = sphi 0, %s90
      %s92 = sphi 0, %s90
      %s93 = sphi 0, %s92
      %s107 = sphi 0, %s93
      %s111 = sphi 0, %s111
      %s113 = sphi 0, %s111
      %s114 = sphi 0, %s113
      %s128 = sphi 0, %s114
      %s134 = sphi 0, %s136
      %s137 = sphi 0, %s134
      %s138 = sphi 0, %s137
      %s154 = sphi 0, %s138
    $region4: #{tpu_custom_call.1} parent=1 // loop_header_branch
      %17 = sbr.rel (%p15) target = $region8
    $region5: #{tpu_custom_call.1} parent=1 // loop_body
      %s19 = ssub.s32 %s14, 1
      %s20 = ssub.s32 %s14, 2
      %s21 = sadd.s32 %s14, 1
      %s22 = ssub.s32 %s14, %s21
      %p23 = scmp.eq.s32.totalorder %s22, 0
      %s25 = sadd.s32 %s24, 1
      %s26 = scalar_select %p23, %s24, %s25
      %p29 = pneg %p23
      %p30 = scmp.eq.s32.totalorder %s14, 2
      %p31 = por %p29, %p30
      %p32 = scmp.ne.s32.totalorder %s24, %s27
      %p33 = scmp.eq.s32.totalorder %s14, 0
      %p34 = por %p32, %p33
      %p35 = scmp.ne.s32.totalorder %s24, %s27
      %p36 = scmp.eq.s32.totalorder %s19, 2
      %p37 = por %p35, %p36
      %p38 = scmp.ne.s32.totalorder %s27, %s28
      %p39 = scmp.eq.s32.totalorder %s19, 0
      %p40 = por %p38, %p39
      %p41 = scmp.ne.s32.totalorder %s27, %s28
      %p42 = scmp.eq.s32.totalorder %s20, 2
      %p43 = por %p41, %p42
      %p45 = scmp.ne.s32.totalorder %s28, %s44
      %p46 = scmp.eq.s32.totalorder %s20, 0
      %p47 = por %p45, %p46
      %s49 = sadd.s32 %s48, 1
      %p52 = scmp.eq.s32.totalorder %s14, 2
      %p53 = scmp.ne.s32.totalorder %s48, %s50
      %p54 = scmp.eq.s32.totalorder %s14, 0
      %p55 = por %p53, %p54
      %p56 = scmp.ne.s32.totalorder %s48, %s50
      %p57 = scmp.eq.s32.totalorder %s19, 2
      %p58 = por %p56, %p57
      %p59 = scmp.ne.s32.totalorder %s50, %s51
      %p60 = scmp.eq.s32.totalorder %s19, 0
      %p61 = por %p59, %p60
      %p62 = scmp.ne.s32.totalorder %s50, %s51
      %p63 = scmp.eq.s32.totalorder %s20, 2
      %p64 = por %p62, %p63
      %p66 = scmp.ne.s32.totalorder %s51, %s65
      %p67 = scmp.eq.s32.totalorder %s20, 0
      %p68 = por %p66, %p67
      %s70 = sadd.s32 %s69, 1
      %p73 = scmp.eq.s32.totalorder %s14, 2
      %p74 = scmp.ne.s32.totalorder %s69, %s71
      %p75 = scmp.eq.s32.totalorder %s14, 0
      %p76 = por %p74, %p75
      %p77 = scmp.ne.s32.totalorder %s69, %s71
      %p78 = scmp.eq.s32.totalorder %s19, 2
      %p79 = por %p77, %p78
      %p80 = scmp.ne.s32.totalorder %s71, %s72
      %p81 = scmp.eq.s32.totalorder %s19, 0
      %p82 = por %p80, %p81
      %p83 = scmp.ne.s32.totalorder %s71, %s72
      %p84 = scmp.eq.s32.totalorder %s20, 2
      %p85 = por %p83, %p84
      %p87 = scmp.ne.s32.totalorder %s72, %s86
      %p88 = scmp.eq.s32.totalorder %s20, 0
      %p89 = por %p87, %p88
      %s91 = sadd.s32 %s90, 1
      %p94 = scmp.eq.s32.totalorder %s14, 2
      %p95 = scmp.ne.s32.totalorder %s90, %s92
      %p96 = scmp.eq.s32.totalorder %s14, 0
      %p97 = por %p95, %p96
      %p98 = scmp.ne.s32.totalorder %s90, %s92
      %p99 = scmp.eq.s32.totalorder %s19, 2
      %p100 = por %p98, %p99
      %p101 = scmp.ne.s32.totalorder %s92, %s93
      %p102 = scmp.eq.s32.totalorder %s19, 0
      %p103 = por %p101, %p102
      %p104 = scmp.ne.s32.totalorder %s92, %s93
      %p105 = scmp.eq.s32.totalorder %s20, 2
      %p106 = por %p104, %p105
      %p108 = scmp.ne.s32.totalorder %s93, %s107
      %p109 = scmp.eq.s32.totalorder %s20, 0
      %p110 = por %p108, %p109
      %s112 = sadd.s32 %s111, 1
      %p115 = scmp.eq.s32.totalorder %s14, 2
      %p116 = scmp.ne.s32.totalorder %s111, %s113
      %p117 = scmp.eq.s32.totalorder %s14, 0
      %p118 = por %p116, %p117
      %p119 = scmp.ne.s32.totalorder %s111, %s113
      %p120 = scmp.eq.s32.totalorder %s19, 2
      %p121 = por %p119, %p120
      %p122 = scmp.ne.s32.totalorder %s113, %s114
      %p123 = scmp.eq.s32.totalorder %s19, 0
      %p124 = por %p122, %p123
      %p125 = scmp.ne.s32.totalorder %s113, %s114
      %p126 = scmp.eq.s32.totalorder %s20, 2
      %p127 = por %p125, %p126
      %p129 = scmp.ne.s32.totalorder %s114, %s128
      %p130 = scmp.eq.s32.totalorder %s20, 0
      %p131 = por %p129, %p130
      %s132 = ssub.s32 %s14, %s21
      %p133 = scmp.eq.s32.totalorder %s132, 0
      %s135 = sadd.s32 %s134, 1
      %s136 = scalar_select %p133, %s134, %s135
      %p139 = pneg %p133
      %p140 = scmp.eq.s32.totalorder %s14, 2
      %p141 = por %p139, %p140
      %p142 = scmp.ne.s32.totalorder %s134, %s137
      %p143 = scmp.eq.s32.totalorder %s14, 0
      %p144 = por %p142, %p143
      %p145 = scmp.ne.s32.totalorder %s134, %s137
      %p146 = scmp.eq.s32.totalorder %s19, 2
      %p147 = por %p145, %p146
      %p148 = scmp.ne.s32.totalorder %s137, %s138
      %p149 = scmp.eq.s32.totalorder %s19, 0
      %p150 = por %p148, %p149
      %p151 = scmp.ne.s32.totalorder %s137, %s138
      %p152 = scmp.eq.s32.totalorder %s20, 2
      %p153 = por %p151, %p152
      %p155 = scmp.ne.s32.totalorder %s138, %s154
      %p156 = scmp.eq.s32.totalorder %s20, 0
      %p157 = por %p155, %p156
      %p158 = scmp.le.s32.totalorder 1, %s14
      %p159 = scmp.lt.s32.totalorder %s14, 4
      %p160 = pnand %p158, %p159
      %p161 = pneg %p160
      // Predicated region
      $region9: #{tpu_custom_call.1} parent=5 // pred_check
        _
      $region10: #{tpu_custom_call.1} parent=5 // pred_check_branch
        %163 = sbr.rel (%p160) target = $region12
      $region11: #{tpu_custom_call.1} parent=5 // pred_region
        %s164 = ssub.s32 %s14, 1
        // Predicated region
        $region13: #{tpu_custom_call.1} parent=11 // pred_check
          %p165 = pneg %p61
        $region14: #{tpu_custom_call.1} parent=11 // pred_check_branch
          %167 = sbr.rel (%p165) target = $region16
        $region15: #{tpu_custom_call.1} parent=11 // pred_region
          _
        $region16: #{tpu_custom_call.1} parent=11 // pred_fallthru
          _
        // Predicated region
        $region17: #{tpu_custom_call.1} parent=11 // pred_check
          %p168 = pneg %p82
        $region18: #{tpu_custom_call.1} parent=11 // pred_check_branch
          %170 = sbr.rel (%p168) target = $region20
        $region19: #{tpu_custom_call.1} parent=11 // pred_region
          _
        $region20: #{tpu_custom_call.1} parent=11 // pred_fallthru
          _
        // Predicated region
        $region21: #{tpu_custom_call.1} parent=11 // pred_check
          %p171 = pneg %p103
        $region22: #{tpu_custom_call.1} parent=11 // pred_check_branch
          %173 = sbr.rel (%p171) target = $region24
        $region23: #{tpu_custom_call.1} parent=11 // pred_region
          _
        $region24: #{tpu_custom_call.1} parent=11 // pred_fallthru
          _
        // Predicated region
        $region25: #{tpu_custom_call.1} parent=11 // pred_check
          %p174 = pneg %p124
        $region26: #{tpu_custom_call.1} parent=11 // pred_check_branch
          %176 = sbr.rel (%p174) target = $region28
        $region27: #{tpu_custom_call.1} parent=11 // pred_region
          _
        $region28: #{tpu_custom_call.1} parent=11 // pred_fallthru
          _
      $region12: #{tpu_custom_call.1} parent=5 // pred_fallthru
        _
      %p177 = scmp.lt.s32.totalorder %s14, 3
      // Predicated region
      $region29: #{tpu_custom_call.1} parent=5 // pred_check
        %p178 = pneg %p177
      $region30: #{tpu_custom_call.1} parent=5 // pred_check_branch
        %180 = sbr.rel (%p178) target = $region32
      $region31: #{tpu_custom_call.1} parent=5 // pred_region
        // Predicated region
        $region33: #{tpu_custom_call.1} parent=31 // pred_check
          %p181 = pneg %p34
        $region34: #{tpu_custom_call.1} parent=31 // pred_check_branch
          %183 = sbr.rel (%p181) target = $region36
        $region35: #{tpu_custom_call.1} parent=31 // pred_region
          %s184 = smul.u32 16, %s14
          %p185 = scmp.lt.s32.totalorder %s184, 47
          %s186 = scalar_select %p185, %s184, 47
          %s187 = smul.addr %s186, 8
          %s188 = scalar_lea.vmem %s0, %s187
          %s189 = smul.u32 16, %s14
        $region36: #{tpu_custom_call.1} parent=31 // pred_fallthru
          _
      $region32: #{tpu_custom_call.1} parent=5 // pred_fallthru
        _
      %p190 = scmp.le.s32.totalorder 1, %s14
      %p191 = scmp.lt.s32.totalorder %s14, 4
      %p192 = pnand %p190, %p191
      %p193 = pneg %p192
      // Predicated region
      $region37: #{tpu_custom_call.1} parent=5 // pred_check
        _
      $region38: #{tpu_custom_call.1} parent=5 // pred_check_branch
        %195 = sbr.rel (%p192) target = $region40
      $region39: #{tpu_custom_call.1} parent=5 // pred_region
        %s196 = ssub.s32 %s14, 1
        %s197 = smul.u32 16, %s19
        %p198 = scmp.lt.s32.totalorder %s197, 47
        %s199 = scalar_select %p198, %s197, 47
        %s200 = smul.addr %s199, 8
        %s201 = scalar_lea.vmem %s0, %s200
        %p202 = pneg %p40
        %p203 = pneg %p37
        %p204 = pneg %p61
        %p205 = pneg %p58
        %p206 = pneg %p82
        %p207 = pneg %p79
        %p208 = pneg %p103
        %p209 = pneg %p100
        %p210 = pneg %p124
        %p211 = pneg %p121
        %p212 = pneg %p150
        %p213 = pneg %p147
        %s214 = sand.u32 %s137, 1
        %s215 = scalar_lea.sflag [#allocation3], %s214
        %s216 = sand.u32 %s137, 1
        %s217 = smul.addr %s216, 128
        %s218 = scalar_lea.vmem [#allocation2], %s217
        %s219 = smul.u32 16, %s19
        %p220 = scmp.lt.s32.totalorder %s219, 47
        %s221 = scalar_select %p220, %s219, 47
        %s222 = smul.addr %s221, 8
        %s223 = scalar_lea.vmem %s0, %s222
        %s224 = smul.u32 16, %s19
        %s225 = smul.u32 16, %s19
        %v226 = vld [vmem:[%s223] sm:$0xff]
        %v227 = vld [vmem:[%s223 + $0x8] sm:$0xff]
        %v228 = vld [vmem:[%s223 + $0x10] sm:$0xff]
        %v229 = vld [vmem:[%s223 + $0x18] sm:$0xff]
        %v230 = vld [vmem:[%s223 + $0x20] sm:$0xff]
        %v231 = vld [vmem:[%s223 + $0x28] sm:$0xff]
        %v232 = vld [vmem:[%s223 + $0x30] sm:$0xff]
        %v233 = vld [vmem:[%s223 + $0x38] sm:$0xff]
        %v234 = vld [vmem:[%s223 + $0x40] sm:$0xff]
        %v235 = vld [vmem:[%s223 + $0x48] sm:$0xff]
        %v236 = vld [vmem:[%s223 + $0x50] sm:$0xff]
        %v237 = vld [vmem:[%s223 + $0x58] sm:$0xff]
        %v238 = vld [vmem:[%s223 + $0x60] sm:$0xff]
        %v239 = vld [vmem:[%s223 + $0x68] sm:$0xff]
        %v240 = vld [vmem:[%s223 + $0x70] sm:$0xff]
        %v241 = vld [vmem:[%s223 + $0x78] sm:$0xff]
        %v242 = vld [vmem:[%s1] sm:$0xff]
        %v243 = vld [vmem:[%s1 + $0x8] sm:$0xff]
        %v244 = vld [vmem:[%s1 + $0x10] sm:$0xff]
        %v245 = vld [vmem:[%s1 + $0x18] sm:$0xff]
        %v246 = vld [vmem:[%s2] sm:$0x1]
        %v248 = vlaneseq
        %v249 = vshrl.u32 %v248, 7
        %v250 = vsub.s32 0, %v249
        %v251 = vrot.slane %v246, %v250
        %vm253 = vcmask 261120
        %v255 = vsel %vm253, %v226, 0
        %v258 = vsel %vm253, %v227, 0
        %v261 = vsel %vm253, %v228, 0
        %v264 = vsel %vm253, %v229, 0
        %v267 = vsel %vm253, %v230, 0
        %v270 = vsel %vm253, %v231, 0
        %v273 = vsel %vm253, %v232, 0
        %v276 = vsel %vm253, %v233, 0
        %v279 = vsel %vm253, %v234, 0
        %v282 = vsel %vm253, %v235, 0
        %v285 = vsel %vm253, %v236, 0
        %v288 = vsel %vm253, %v237, 0
        %v291 = vsel %vm253, %v238, 0
        %v294 = vsel %vm253, %v239, 0
        %v297 = vsel %vm253, %v240, 0
        %v300 = vsel %vm253, %v241, 0
        %302 = vmatprep.subr.mxu0 0.0
        %303 = vmatpush1.msra.mxu0 %v242
        %304 = vmatprep.subr.mxu0 0.0
        %305 = vmatpush1.msra.mxu0 %v243
        %306 = vmatprep.subr.mxu0 0.0
        %307 = vmatpush1.msra.mxu0 %v244
        %308 = vmatprep.subr.mxu0 0.0
        %309 = vmatpush1.msra.mxu0 %v245
        %310 = vmatprep.subr.mxu0 0.0
        %311 = vmatpush1.msra.mxu0 0.0
        %312 = vmatprep.subr.mxu0 0.0
        %313 = vmatpush1.msra.mxu0 0.0
        %314 = vmatprep.subr.mxu0 0.0
        %315 = vmatpush1.msra.mxu0 0.0
        %316 = vmatprep.subr.mxu0 0.0
        %317 = vmatpush1.msra.mxu0 0.0
        %318 = vmatprep.subr.mxu0 0.0
        %319 = vmatpush1.msra.mxu0 0.0
        %320 = vmatprep.subr.mxu0 0.0
        %321 = vmatpush1.msra.mxu0 0.0
        %322 = vmatprep.subr.mxu0 0.0
        %323 = vmatpush1.msra.mxu0 0.0
        %324 = vmatprep.subr.mxu0 0.0
        %325 = vmatpush1.msra.mxu0 0.0
        %326 = vmatprep.subr.mxu0 0.0
        %327 = vmatpush1.msra.mxu0 0.0
        %328 = vmatprep.subr.mxu0 0.0
        %329 = vmatpush1.msra.mxu0 0.0
        %330 = vmatprep.subr.mxu0 0.0
        %331 = vmatpush1.msra.mxu0 0.0
        %332 = vmatprep.subr.mxu0 0.0
        %333 = vmatpush1.msra.mxu0 0.0
        %334 = vmatprep.subr.mxu0 0.0
        %335 = vmatpush1.msra.mxu0 0.0
        %336 = vmatprep.subr.mxu0 0.0
        %337 = vmatpush1.msra.mxu0 0.0
        %338 = vmatprep.subr.mxu0 0.0
        %339 = vmatpush1.msra.mxu0 0.0
        %340 = vmatprep.subr.mxu0 0.0
        %341 = vmatpush1.msra.mxu0 0.0
        %342 = vmatprep.subr.mxu0 0.0
        %343 = vmatpush1.msra.mxu0 0.0
        %344 = vmatprep.subr.mxu0 0.0
        %345 = vmatpush1.msra.mxu0 0.0
        %346 = vmatprep.subr.mxu0 0.0
        %347 = vmatpush1.msra.mxu0 0.0
        %348 = vmatprep.subr.mxu0 0.0
        %349 = vmatpush1.msra.mxu0 0.0
        %350 = vmatprep.subr.mxu0 0.0
        %351 = vmatpush1.msra.mxu0 0.0
        %352 = vmatprep.subr.mxu0 0.0
        %353 = vmatpush1.msra.mxu0 0.0
        %354 = vmatprep.subr.mxu0 0.0
        %355 = vmatpush1.msra.mxu0 0.0
        %356 = vmatprep.subr.mxu0 0.0
        %357 = vmatpush1.msra.mxu0 0.0
        %358 = vmatprep.subr.mxu0 0.0
        %359 = vmatpush1.msra.mxu0 0.0
        %360 = vmatprep.subr.mxu0 0.0
        %361 = vmatpush1.msra.mxu0 0.0
        %362 = vmatprep.subr.mxu0 0.0
        %363 = vmatpush1.msra.mxu0 0.0
        %364 = vmatprep.subr.mxu0 0.0
        %365 = vmatpush1.msra.mxu0 0.0
        %366 = vmatprep.mubr.f32.mxu0 0.0
        %367 = vmatmul.mubr.f32.gmra.mrb[0].mxu0 %v255
        %v368 = vpop.f32.mrb[0].mxu0
        %v369 = vadd.f32 %v251, %v368
        %v370 = vpop.f32.mrb[0].mxu0
        %371 = vmatprep.mubr.f32.mxu0 0.0
        %372 = vmatmul.mubr.f32.gmra.mrb[0].mxu0 %v258
        %v373 = vpop.f32.mrb[0].mxu0
        %v374 = vadd.f32 %v251, %v373
        %v375 = vpop.f32.mrb[0].mxu0
        %376 = vmatprep.mubr.f32.mxu0 0.0
        %377 = vmatmul.mubr.f32.gmra.mrb[0].mxu0 %v261
        %v378 = vpop.f32.mrb[0].mxu0
        %v379 = vadd.f32 %v251, %v378
        %v380 = vpop.f32.mrb[0].mxu0
        %381 = vmatprep.mubr.f32.mxu0 0.0
        %382 = vmatmul.mubr.f32.gmra.mrb[0].mxu0 %v264
        %v383 = vpop.f32.mrb[0].mxu0
        %v384 = vadd.f32 %v251, %v383
        %v385 = vpop.f32.mrb[0].mxu0
        %386 = vmatprep.mubr.f32.mxu0 0.0
        %387 = vmatmul.mubr.f32.gmra.mrb[0].mxu0 %v267
        %v388 = vpop.f32.mrb[0].mxu0
        %v389 = vadd.f32 %v251, %v388
        %v390 = vpop.f32.mrb[0].mxu0
        %391 = vmatprep.mubr.f32.mxu0 0.0
        %392 = vmatmul.mubr.f32.gmra.mrb[0].mxu0 %v270
        %v393 = vpop.f32.mrb[0].mxu0
        %v394 = vadd.f32 %v251, %v393
        %v395 = vpop.f32.mrb[0].mxu0
        %396 = vmatprep.mubr.f32.mxu0 0.0
        %397 = vmatmul.mubr.f32.gmra.mrb[0].mxu0 %v273
        %v398 = vpop.f32.mrb[0].mxu0
        %v399 = vadd.f32 %v251, %v398
        %v400 = vpop.f32.mrb[0].mxu0
        %401 = vmatprep.mubr.f32.mxu0 0.0
        %402 = vmatmul.mubr.f32.gmra.mrb[0].mxu0 %v276
        %v403 = vpop.f32.mrb[0].mxu0
        %v404 = vadd.f32 %v251, %v403
        %v405 = vpop.f32.mrb[0].mxu0
        %406 = vmatprep.mubr.f32.mxu0 0.0
        %407 = vmatmul.mubr.f32.gmra.mrb[0].mxu0 %v279
        %v408 = vpop.f32.mrb[0].mxu0
        %v409 = vadd.f32 %v251, %v408
        %v410 = vpop.f32.mrb[0].mxu0
        %411 = vmatprep.mubr.f32.mxu0 0.0
        %412 = vmatmul.mubr.f32.gmra.mrb[0].mxu0 %v282
        %v413 = vpop.f32.mrb[0].mxu0
        %v414 = vadd.f32 %v251, %v413
        %v415 = vpop.f32.mrb[0].mxu0
        %416 = vmatprep.mubr.f32.mxu0 0.0
        %417 = vmatmul.mubr.f32.gmra.mrb[0].mxu0 %v285
        %v418 = vpop.f32.mrb[0].mxu0
        %v419 = vadd.f32 %v251, %v418
        %v420 = vpop.f32.mrb[0].mxu0
        %421 = vmatprep.mubr.f32.mxu0 0.0
        %422 = vmatmul.mubr.f32.gmra.mrb[0].mxu0 %v288
        %v423 = vpop.f32.mrb[0].mxu0
        %v424 = vadd.f32 %v251, %v423
        %v425 = vpop.f32.mrb[0].mxu0
        %426 = vmatprep.mubr.f32.mxu0 0.0
        %427 = vmatmul.mubr.f32.gmra.mrb[0].mxu0 %v291
        %v428 = vpop.f32.mrb[0].mxu0
        %v429 = vadd.f32 %v251, %v428
        %v430 = vpop.f32.mrb[0].mxu0
        %431 = vmatprep.mubr.f32.mxu0 0.0
        %432 = vmatmul.mubr.f32.gmra.mrb[0].mxu0 %v294
        %v433 = vpop.f32.mrb[0].mxu0
        %v434 = vadd.f32 %v251, %v433
        %v435 = vpop.f32.mrb[0].mxu0
        %436 = vmatprep.mubr.f32.mxu0 0.0
        %437 = vmatmul.mubr.f32.gmra.mrb[0].mxu0 %v297
        %v438 = vpop.f32.mrb[0].mxu0
        %v439 = vadd.f32 %v251, %v438
        %v440 = vpop.f32.mrb[0].mxu0
        %441 = vmatprep.mubr.f32.mxu0 0.0
        %442 = vmatmul.mubr.f32.gmra.mrb[0].mxu0 %v300
        %v443 = vpop.f32.mrb[0].mxu0
        %v444 = vadd.f32 %v251, %v443
        %v445 = vpop.f32.mrb[0].mxu0
        %446 = vdwg.mxu0
        %v447 = vmax.f32 %v369, 0.0
        %v448 = vmax.f32 %v374, 0.0
        %v449 = vmax.f32 %v379, 0.0
        %v450 = vmax.f32 %v384, 0.0
        %v451 = vmax.f32 %v389, 0.0
        %v452 = vmax.f32 %v394, 0.0
        %v453 = vmax.f32 %v399, 0.0
        %v454 = vmax.f32 %v404, 0.0
        %v455 = vmax.f32 %v409, 0.0
        %v456 = vmax.f32 %v414, 0.0
        %v457 = vmax.f32 %v419, 0.0
        %v458 = vmax.f32 %v424, 0.0
        %v459 = vmax.f32 %v429, 0.0
        %v460 = vmax.f32 %v434, 0.0
        %v461 = vmax.f32 %v439, 0.0
        %v462 = vmax.f32 %v444, 0.0
        %v463 = vld [vmem:[%s3] sm:$0xff]
        %v464 = vld [vmem:[%s3 + $0x8] sm:$0xff]
        %v465 = vld [vmem:[%s3 + $0x10] sm:$0xff]
        %v466 = vld [vmem:[%s3 + $0x18] sm:$0xff]
        %v467 = vld [vmem:[%s3 + $0x20] sm:$0xff]
        %v468 = vld [vmem:[%s3 + $0x28] sm:$0xff]
        %v469 = vld [vmem:[%s3 + $0x30] sm:$0xff]
        %v470 = vld [vmem:[%s3 + $0x38] sm:$0xff]
        %v471 = vld [vmem:[%s4] sm:$0x1]
        %v473 = vlaneseq
        %v474 = vshrl.u32 %v473, 7
        %v475 = vsub.s32 0, %v474
        %v476 = vrot.slane %v471, %v475
        %vm478 = vcmask 523264
        %v480 = vsel %vm478, %v447, 0
        %v483 = vsel %vm478, %v448, 0
        %v486 = vsel %vm478, %v449, 0
        %v489 = vsel %vm478, %v450, 0
        %v492 = vsel %vm478, %v451, 0
        %v495 = vsel %vm478, %v452, 0
        %v498 = vsel %vm478, %v453, 0
        %v501 = vsel %vm478, %v454, 0
        %v504 = vsel %vm478, %v455, 0
        %v507 = vsel %vm478, %v456, 0
        %v510 = vsel %vm478, %v457, 0
        %v513 = vsel %vm478, %v458, 0
        %v516 = vsel %vm478, %v459, 0
        %v519 = vsel %vm478, %v460, 0
        %v522 = vsel %vm478, %v461, 0
        %v525 = vsel %vm478, %v462, 0
        %527 = vmatprep.subr.mxu0 0.0
        %528 = vmatpush1.msra.mxu0 %v463
        %529 = vmatprep.subr.mxu0 0.0
        %530 = vmatpush1.msra.mxu0 %v464
        %531 = vmatprep.subr.mxu0 0.0
        %532 = vmatpush1.msra.mxu0 %v465
        %533 = vmatprep.subr.mxu0 0.0
        %534 = vmatpush1.msra.mxu0 %v466
        %535 = vmatprep.subr.mxu0 0.0
        %536 = vmatpush1.msra.mxu0 %v467
        %537 = vmatprep.subr.mxu0 0.0
        %538 = vmatpush1.msra.mxu0 %v468
        %539 = vmatprep.subr.mxu0 0.0
        %540 = vmatpush1.msra.mxu0 %v469
        %541 = vmatprep.subr.mxu0 0.0
        %542 = vmatpush1.msra.mxu0 %v470
        %543 = vmatprep.subr.mxu0 0.0
        %544 = vmatpush1.msra.mxu0 0.0
        %545 = vmatprep.subr.mxu0 0.0
        %546 = vmatpush1.msra.mxu0 0.0
        %547 = vmatprep.subr.mxu0 0.0
        %548 = vmatpush1.msra.mxu0 0.0
        %549 = vmatprep.subr.mxu0 0.0
        %550 = vmatpush1.msra.mxu0 0.0
        %551 = vmatprep.subr.mxu0 0.0
        %552 = vmatpush1.msra.mxu0 0.0
        %553 = vmatprep.subr.mxu0 0.0
        %554 = vmatpush1.msra.mxu0 0.0
        %555 = vmatprep.subr.mxu0 0.0
        %556 = vmatpush1.msra.mxu0 0.0
        %557 = vmatprep.subr.mxu0 0.0
        %558 = vmatpush1.msra.mxu0 0.0
        %559 = vmatprep.subr.mxu0 0.0
        %560 = vmatpush1.msra.mxu0 0.0
        %561 = vmatprep.subr.mxu0 0.0
        %562 = vmatpush1.msra.mxu0 0.0
        %563 = vmatprep.subr.mxu0 0.0
        %564 = vmatpush1.msra.mxu0 0.0
        %565 = vmatprep.subr.mxu0 0.0
        %566 = vmatpush1.msra.mxu0 0.0
        %567 = vmatprep.subr.mxu0 0.0
        %568 = vmatpush1.msra.mxu0 0.0
        %569 = vmatprep.subr.mxu0 0.0
        %570 = vmatpush1.msra.mxu0 0.0
        %571 = vmatprep.subr.mxu0 0.0
        %572 = vmatpush1.msra.mxu0 0.0
        %573 = vmatprep.subr.mxu0 0.0
        %574 = vmatpush1.msra.mxu0 0.0
        %575 = vmatprep.subr.mxu0 0.0
        %576 = vmatpush1.msra.mxu0 0.0
        %577 = vmatprep.subr.mxu0 0.0
        %578 = vmatpush1.msra.mxu0 0.0
        %579 = vmatprep.subr.mxu0 0.0
        %580 = vmatpush1.msra.mxu0 0.0
        %581 = vmatprep.subr.mxu0 0.0
        %582 = vmatpush1.msra.mxu0 0.0
        %583 = vmatprep.subr.mxu0 0.0
        %584 = vmatpush1.msra.mxu0 0.0
        %585 = vmatprep.subr.mxu0 0.0
        %586 = vmatpush1.msra.mxu0 0.0
        %587 = vmatprep.subr.mxu0 0.0
        %588 = vmatpush1.msra.mxu0 0.0
        %589 = vmatprep.subr.mxu0 0.0
        %590 = vmatpush1.msra.mxu0 0.0
        %591 = vmatprep.mubr.f32.mxu0 0.0
        %592 = vmatmul.mubr.f32.gmra.mrb[0].mxu0 %v480
        %v593 = vpop.f32.mrb[0].mxu0
        %v594 = vadd.f32 %v476, %v593
        %v595 = vpop.f32.mrb[0].mxu0
        %596 = vmatprep.mubr.f32.mxu0 0.0
        %597 = vmatmul.mubr.f32.gmra.mrb[0].mxu0 %v483
        %v598 = vpop.f32.mrb[0].mxu0
        %v599 = vadd.f32 %v476, %v598
        %v600 = vpop.f32.mrb[0].mxu0
        %601 = vmatprep.mubr.f32.mxu0 0.0
        %602 = vmatmul.mubr.f32.gmra.mrb[0].mxu0 %v486
        %v603 = vpop.f32.mrb[0].mxu0
        %v604 = vadd.f32 %v476, %v603
        %v605 = vpop.f32.mrb[0].mxu0
        %606 = vmatprep.mubr.f32.mxu0 0.0
        %607 = vmatmul.mubr.f32.gmra.mrb[0].mxu0 %v489
        %v608 = vpop.f32.mrb[0].mxu0
        %v609 = vadd.f32 %v476, %v608
        %v610 = vpop.f32.mrb[0].mxu0
        %611 = vmatprep.mubr.f32.mxu0 0.0
        %612 = vmatmul.mubr.f32.gmra.mrb[0].mxu0 %v492
        %v613 = vpop.f32.mrb[0].mxu0
        %v614 = vadd.f32 %v476, %v613
        %v615 = vpop.f32.mrb[0].mxu0
        %616 = vmatprep.mubr.f32.mxu0 0.0
        %617 = vmatmul.mubr.f32.gmra.mrb[0].mxu0 %v495
        %v618 = vpop.f32.mrb[0].mxu0
        %v619 = vadd.f32 %v476, %v618
        %v620 = vpop.f32.mrb[0].mxu0
        %621 = vmatprep.mubr.f32.mxu0 0.0
        %622 = vmatmul.mubr.f32.gmra.mrb[0].mxu0 %v498
        %v623 = vpop.f32.mrb[0].mxu0
        %v624 = vadd.f32 %v476, %v623
        %v625 = vpop.f32.mrb[0].mxu0
        %626 = vmatprep.mubr.f32.mxu0 0.0
        %627 = vmatmul.mubr.f32.gmra.mrb[0].mxu0 %v501
        %v628 = vpop.f32.mrb[0].mxu0
        %v629 = vadd.f32 %v476, %v628
        %v630 = vpop.f32.mrb[0].mxu0
        %631 = vmatprep.mubr.f32.mxu0 0.0
        %632 = vmatmul.mubr.f32.gmra.mrb[0].mxu0 %v504
        %v633 = vpop.f32.mrb[0].mxu0
        %v634 = vadd.f32 %v476, %v633
        %v635 = vpop.f32.mrb[0].mxu0
        %636 = vmatprep.mubr.f32.mxu0 0.0
        %637 = vmatmul.mubr.f32.gmra.mrb[0].mxu0 %v507
        %v638 = vpop.f32.mrb[0].mxu0
        %v639 = vadd.f32 %v476, %v638
        %v640 = vpop.f32.mrb[0].mxu0
        %641 = vmatprep.mubr.f32.mxu0 0.0
        %642 = vmatmul.mubr.f32.gmra.mrb[0].mxu0 %v510
        %v643 = vpop.f32.mrb[0].mxu0
        %v644 = vadd.f32 %v476, %v643
        %v645 = vpop.f32.mrb[0].mxu0
        %646 = vmatprep.mubr.f32.mxu0 0.0
        %647 = vmatmul.mubr.f32.gmra.mrb[0].mxu0 %v513
        %v648 = vpop.f32.mrb[0].mxu0
        %v649 = vadd.f32 %v476, %v648
        %v650 = vpop.f32.mrb[0].mxu0
        %651 = vmatprep.mubr.f32.mxu0 0.0
        %652 = vmatmul.mubr.f32.gmra.mrb[0].mxu0 %v516
        %v653 = vpop.f32.mrb[0].mxu0
        %v654 = vadd.f32 %v476, %v653
        %v655 = vpop.f32.mrb[0].mxu0
        %656 = vmatprep.mubr.f32.mxu0 0.0
        %657 = vmatmul.mubr.f32.gmra.mrb[0].mxu0 %v519
        %v658 = vpop.f32.mrb[0].mxu0
        %v659 = vadd.f32 %v476, %v658
        %v660 = vpop.f32.mrb[0].mxu0
        %661 = vmatprep.mubr.f32.mxu0 0.0
        %662 = vmatmul.mubr.f32.gmra.mrb[0].mxu0 %v522
        %v663 = vpop.f32.mrb[0].mxu0
        %v664 = vadd.f32 %v476, %v663
        %v665 = vpop.f32.mrb[0].mxu0
        %666 = vmatprep.mubr.f32.mxu0 0.0
        %667 = vmatmul.mubr.f32.gmra.mrb[0].mxu0 %v525
        %v668 = vpop.f32.mrb[0].mxu0
        %v669 = vadd.f32 %v476, %v668
        %v670 = vpop.f32.mrb[0].mxu0
        %671 = vdwg.mxu0
        %672 = vst [vmem:[%s218] sm:$0xff] %v594
        %673 = vst [vmem:[%s218 + $0x8] sm:$0xff] %v599
        %674 = vst [vmem:[%s218 + $0x10] sm:$0xff] %v604
        %675 = vst [vmem:[%s218 + $0x18] sm:$0xff] %v609
        %676 = vst [vmem:[%s218 + $0x20] sm:$0xff] %v614
        %677 = vst [vmem:[%s218 + $0x28] sm:$0xff] %v619
        %678 = vst [vmem:[%s218 + $0x30] sm:$0xff] %v624
        %679 = vst [vmem:[%s218 + $0x38] sm:$0xff] %v629
        %680 = vst [vmem:[%s218 + $0x40] sm:$0xff] %v634
        %681 = vst [vmem:[%s218 + $0x48] sm:$0xff] %v639
        %682 = vst [vmem:[%s218 + $0x50] sm:$0xff] %v644
        %683 = vst [vmem:[%s218 + $0x58] sm:$0xff] %v649
        %684 = vst [vmem:[%s218 + $0x60] sm:$0xff] %v654
        %685 = vst [vmem:[%s218 + $0x68] sm:$0xff] %v659
        %686 = vst [vmem:[%s218 + $0x70] sm:$0xff] %v664
        %687 = vst [vmem:[%s218 + $0x78] sm:$0xff] %v669
        %s688 = sand.u32 %s137, 1
        %s689 = scalar_lea.sflag [#allocation3], %s688
        %s690 = sand.u32 %s137, 1
        %s691 = smul.addr %s690, 128
        %s692 = scalar_lea.vmem [#allocation2], %s691
        // Predicated region
        $region41: #{tpu_custom_call.1} parent=39 // pred_check
          %p693 = pneg %p147
        $region42: #{tpu_custom_call.1} parent=39 // pred_check_branch
          %695 = sbr.rel (%p693) target = $region44
        $region43: #{tpu_custom_call.1} parent=39 // pred_region
          %s696 = smul.u32 16, %s19
          %s698 = ssub.s32 2048, 2048
          %699 = vsyncadd %s689, %s698
          %s700 = smul.addr %s696, 128
          %s701 = scalar_lea.hbm %s5, %s700
          %s702 = sshll.u32 %s692, 4
          %s703 = int_to_ptr.vmem [resolvable:$true] %s702
          %708 = dma.vmem_to_hbm [thread:$0]  %s703, 2048, %s701, %s689, 128, 128, 8
        $region44: #{tpu_custom_call.1} parent=39 // pred_fallthru
          _
      $region40: #{tpu_custom_call.1} parent=5 // pred_fallthru
        _
      %p709 = scmp.le.s32.totalorder 2, %s14
      // Predicated region
      $region45: #{tpu_custom_call.1} parent=5 // pred_check
        %p710 = pneg %p709
      $region46: #{tpu_custom_call.1} parent=5 // pred_check_branch
        %712 = sbr.rel (%p710) target = $region48
      $region47: #{tpu_custom_call.1} parent=5 // pred_region
        %s713 = ssub.s32 %s14, 2
        // Predicated region
        $region49: #{tpu_custom_call.1} parent=47 // pred_check
          %p714 = pneg %p153
        $region50: #{tpu_custom_call.1} parent=47 // pred_check_branch
          %716 = sbr.rel (%p714) target = $region52
        $region51: #{tpu_custom_call.1} parent=47 // pred_region
          %s717 = sand.u32 %s138, 1
          %s718 = scalar_lea.sflag [#allocation3], %s717
          %s719 = sand.u32 %s138, 1
          %s720 = smul.addr %s719, 128
          %s721 = scalar_lea.vmem [#allocation2], %s720
          %722 = dma.done %s718, 2048
        $region52: #{tpu_custom_call.1} parent=47 // pred_fallthru
          _
      $region48: #{tpu_custom_call.1} parent=5 // pred_fallthru
        _
    $region6: #{tpu_custom_call.1} parent=1 // loop_footer
      %s18 = sadd.s32 1, %s14
    $region7: #{tpu_custom_call.1} parent=1 // loop_footer_branch
      %13 = sbr.rel target = $region3
    $region8: #{tpu_custom_call.1} parent=1 // loop_exit
      _
    %723 = vsyncpa [#allocation3], 1
    %s724 = scalar_lea.sflag [#allocation3], 1
    %725 = vsyncpa %s724, 1

</llo_original>
